<compile_context>
chip_gen: v6e
topology: v6e:2x2x1
jax: 0.10.0
libtpu: 0.0.40
codegen_flags: <defaults>
</compile_context>

<pallas_src>
import math

import jax
import jax.numpy as jnp
from jax.experimental import pallas as pl
from jax.experimental.pallas import tpu as pltpu

LANE = 128


def _round_up(x, m):
    return ((x + m - 1) // m) * m


# --------------------------------------------------------------------------
# Transformer kernel: h = ReLU(x @ W1 + b1), computed once, emitted as bf16.
# --------------------------------------------------------------------------
def _transformer_kernel(x_ref, w1_ref, b1_ref, h_ref):
    h = jnp.dot(x_ref[...], w1_ref[...], preferred_element_type=jnp.float32)
    h_ref[...] = jnp.maximum(h + b1_ref[...], 0.0).astype(h_ref.dtype)


def _compute_h(xp, w1p, b1p, *, tr):
    n_pad, f_pad = xp.shape
    h_pad = w1p.shape[1]
    return pl.pallas_call(
        _transformer_kernel,
        out_shape=jax.ShapeDtypeStruct((n_pad, h_pad), jnp.bfloat16),
        grid_spec=pltpu.PrefetchScalarGridSpec(
            num_scalar_prefetch=0,
            grid=(n_pad // tr,),
            in_specs=[
                pl.BlockSpec((tr, f_pad), lambda i: (i, 0)),       # x row block
                pl.BlockSpec((f_pad, h_pad), lambda i: (0, 0)),    # W1 (resident)
                pl.BlockSpec((1, h_pad), lambda i: (0, 0)),        # b1 (f32)
            ],
            out_specs=pl.BlockSpec((tr, h_pad), lambda i: (i, 0)),
        ),
        compiler_params=pltpu.CompilerParams(
            dimension_semantics=("parallel",),
        ),
    )(xp, w1p, b1p)


# --------------------------------------------------------------------------
# Main kernel: p = A @ h (f32 accumulator), then predictor + log_softmax.
# --------------------------------------------------------------------------
def _make_spmm_predict_kernel(num_classes):
    """Fused SpMM + predictor + log_softmax; num_classes masks padded lanes."""

    def kernel(h_ref, a_ref, w2_ref, b2_ref, out_ref, acc_ref):
        k = pl.program_id(1)

        # Reset the propagation accumulator at the start of each dst sweep.
        @pl.when(k == 0)
        def _():
            acc_ref[...] = jnp.zeros_like(acc_ref)

        # propagator (aggr='add', flow='target_to_source'): acc += A_blk @ h_blk
        acc_ref[...] += jnp.dot(
            a_ref[...], h_ref[...], preferred_element_type=jnp.float32
        )

        # predictor + log_softmax once the dst reduction for this src block is done.
        @pl.when(k == pl.num_programs(1) - 1)
        def _():
            y = jnp.dot(
                acc_ref[...].astype(w2_ref.dtype),
                w2_ref[...],
                preferred_element_type=jnp.float32,
            ) + b2_ref[...]
            # Mask padded class lanes so they do not perturb the log_softmax.
            col = jax.lax.broadcasted_iota(jnp.int32, y.shape, 1)
            valid = col < num_classes
            y = jnp.where(valid, y, jnp.finfo(jnp.float32).min)
            m = jnp.max(y, axis=1, keepdims=True)
            e = jnp.where(valid, jnp.exp(y - m), 0.0)
            lse = m + jnp.log(jnp.sum(e, axis=1, keepdims=True))
            out_ref[...] = y - lse

    return kernel


def _vmem_limit_bytes(tm, tk, f_pad, h_pad, c_pad):
    """Size the VMEM request from the actual footprint (+ ~2x headroom)."""
    bf16, f32 = 2, 4
    spmm = (
        2 * tm * tk * bf16            # A double buffer (dominant stream)
        + 2 * tk * h_pad * bf16       # h double buffer
        + tm * h_pad * f32            # accumulator scratch
        + 2 * tm * c_pad * f32        # out double buffer
        + 2 * (h_pad * c_pad * bf16 + c_pad * f32)  # W2 / b2
    )
    trans = (
        2 * tk * f_pad * bf16         # x double buffer
        + 2 * f_pad * h_pad * bf16    # W1
        + 2 * h_pad * f32             # b1
        + 2 * tk * h_pad * bf16       # h out double buffer
    )
    need = max(spmm, trans)
    # >= 8 MiB so small problems aren't artificially constrained, <= 32 MiB so
    # we never request a whole v7x TensorCore's 64 MiB of physical VMEM.
    return min(max(2 * need, 8 << 20), 32 << 20)


def _pick_tiles(n, tm=None, tk=None):
    """Large tiles for HBM-roofline efficiency; keep >=2 row blocks for megacore."""
    if tm is None:
        tm = min(512, _round_up(n, LANE))
        # Guarantee at least 2 src-row blocks so the "parallel" axis can shard
        # across the 2 TensorCores on v7x (halving keeps tm a multiple of 8).
        while tm > LANE and _round_up(n, tm) // tm < 2:
            tm //= 2
    if tk is None:
        tk = min(1024, _round_up(n, LANE))  # deep contraction feeds 256-wide MXUs
    return tm, tk


def pushnet_forward(x, adj, w1, b1, w2, b2, *, tm=None, tk=None):
    """PushNet-Full forward (eval mode).

    x:   [N, F] f32 node features
    adj: [N, N] f32 dense adjacency (scatter-added edge weights, A[src, dst])
    w1:  [F, H], b1: [1, H]   (transformer Linear, weight pre-transposed)
    w2:  [H, C], b2: [1, C]   (predictor  Linear, weight pre-transposed)
    returns [N, C] f32 log-probabilities.
    """
    n, f = x.shape
    hdim = w1.shape[1]
    c = w2.shape[1]

    f_pad = _round_up(f, LANE)
    h_pad = _round_up(hdim, LANE)
    c_pad = _round_up(c, LANE)

    tm, tk = _pick_tiles(n, tm, tk)

    # Pad rows and columns of A independently (no lcm blow-up for tm != tk).
    n_rows_pad = _round_up(n, tm)
    n_cols_pad = _round_up(n, tk)

    # Zero-pad: padded dst columns of A are zero so padded h rows never
    # contaminate the reduction; padded src rows are sliced off; padded W
    # entries are zero so padded hidden lanes stay exactly zero through ReLU.
    xp = jnp.zeros((n_cols_pad, f_pad), jnp.float32).at[:n, :f].set(x)
    ap = jnp.zeros((n_rows_pad, n_cols_pad), jnp.float32).at[:n, :n].set(adj)
    w1p = jnp.zeros((f_pad, h_pad), jnp.float32).at[:f, :hdim].set(w1)
    b1p = jnp.zeros((1, h_pad), jnp.float32).at[:, :hdim].set(b1.reshape(1, -1))
    w2p = jnp.zeros((h_pad, c_pad), jnp.float32).at[:hdim, :c].set(w2)
    b2p = jnp.zeros((1, c_pad), jnp.float32).at[:, :c].set(b2.reshape(1, -1))

    # bf16 operands (A dominates HBM traffic); all accumulation stays f32.
    xp = xp.astype(jnp.bfloat16)
    ap = ap.astype(jnp.bfloat16)
    w1p = w1p.astype(jnp.bfloat16)
    w2p = w2p.astype(jnp.bfloat16)

    # h = ReLU(x @ W1 + b1), computed once and streamed (not recomputed per tile).
    hp = _compute_h(xp, w1p, b1p, tr=tk)          # [n_cols_pad, h_pad] bf16

    grid = (n_rows_pad // tm, n_cols_pad // tk)

    out = pl.pallas_call(
        _make_spmm_predict_kernel(c),
        out_shape=jax.ShapeDtypeStruct((n_rows_pad, c_pad), jnp.float32),
        grid_spec=pltpu.PrefetchScalarGridSpec(
            num_scalar_prefetch=0,
            grid=grid,
            in_specs=[
                pl.BlockSpec((tk, h_pad), lambda i, k: (k, 0)),      # h, dst block
                # Dominant stream. If profiling shows exposed DMA at step
                # boundaries, sweep pipeline_mode=pl.Buffered(3) here.
                pl.BlockSpec((tm, tk), lambda i, k: (i, k)),         # A tile
                pl.BlockSpec((h_pad, c_pad), lambda i, k: (0, 0)),   # W2
                pl.BlockSpec((1, c_pad), lambda i, k: (0, 0)),       # b2
            ],
            out_specs=pl.BlockSpec((tm, c_pad), lambda i, k: (i, 0)),
            scratch_shapes=[pltpu.VMEM((tm, h_pad), jnp.float32)],
        ),
        compiler_params=pltpu.CompilerParams(
            dimension_semantics=("parallel", "arbitrary"),
            vmem_limit_bytes=_vmem_limit_bytes(tm, tk, f_pad, h_pad, c_pad),
        ),
    )(hp, ap, w2p, b2p)

    return out[:n, :c]


# --------------------------------------------------------------------------
# Parameter init / adjacency construction / self-test
# --------------------------------------------------------------------------
def kaiming_uniform_linear(key, fan_in, fan_out):
    """PyTorch Linear init: kaiming_uniform_(a=sqrt(5)) -> U(-1/sqrt(fan_in), 1/sqrt(fan_in))."""
    kw, kb = jax.random.split(key)
    bound = 1.0 / math.sqrt(fan_in)
    # stored as [in, out] (transpose of torch's [out, in]) so the kernel does x @ W
    w = jax.random.uniform(kw, (fan_in, fan_out), jnp.float32, -bound, bound)
    b = jax.random.uniform(kb, (1, fan_out), jnp.float32, -bound, bound)
    return w, b


def build_dense_adjacency(edge_index, edge_weight, num_nodes):
    # flow='target_to_source', aggr='add':
    #   out[edge_index[0, e]] += edge_weight[e] * x[edge_index[1, e]]
    # => A[src, dst] accumulates the edge weight.
    src, dst = edge_index[0], edge_index[1]
    adj = jnp.zeros((num_nodes, num_nodes), jnp.float32)
    return adj.at[src, dst].add(edge_weight)


def _reference(x, adj, w1, b1, w2, b2):
    """Pure-JAX reference mirroring the kernel's precision path
    (bf16 operands, f32 accumulation, f32 log_softmax)."""
    xb = x.astype(jnp.bfloat16)
    ab = adj.astype(jnp.bfloat16)
    w1b = w1.astype(jnp.bfloat16)
    w2b = w2.astype(jnp.bfloat16)
    h = jnp.maximum(jnp.dot(xb, w1b, preferred_element_type=jnp.float32) + b1, 0.0)
    p = jnp.dot(ab, h.astype(jnp.bfloat16), preferred_element_type=jnp.float32)
    y = jnp.dot(p.astype(jnp.bfloat16), w2b, preferred_element_type=jnp.float32) + b2
    return y - jax.scipy.special.logsumexp(y, axis=1, keepdims=True)


if __name__ == "__main__":
    # small synthetic problem consistent with the module
    num_nodes = 300
    in_features = 32
    hidden_size = 32
    num_classes = 8
    num_edges = 1200

    key = jax.random.PRNGKey(0)
    kx, ke, kw, k1, k2 = jax.random.split(key, 5)

    x = jax.random.normal(kx, (num_nodes, in_features), jnp.float32)
    edge_index = jax.random.randint(ke, (2, num_edges), 0, num_nodes, jnp.int32)
    edge_weight = jax.random.uniform(kw, (num_edges,), jnp.float32)

    # parameters (deterministic, PyTorch-style init)
    w1, b1 = kaiming_uniform_linear(k1, in_features, hidden_size)   # transformer Linear
    w2, b2 = kaiming_uniform_linear(k2, hidden_size, num_classes)   # predictor Linear

    adj = build_dense_adjacency(edge_index, edge_weight, num_nodes)
    ref = _reference(x, adj, w1, b1, w2, b2)

    # 1) default (perf-tuned) tiles
    out = pushnet_forward(x, adj, w1, b1, w2, b2)
    out = jax.block_until_ready(out)
    assert out.shape == (num_nodes, num_classes)
    err = float(jnp.max(jnp.abs(out - ref)))
    assert jnp.allclose(out, ref, atol=1e-2, rtol=1e-2), err

    # 2) small tiles to exercise the multi-block dst reduction / accumulator path
    out_small = pushnet_forward(x, adj, w1, b1, w2, b2, tm=128, tk=128)
    out_small = jax.block_until_ready(out_small)
    err_small = float(jnp.max(jnp.abs(out_small - ref)))
    assert jnp.allclose(out_small, ref, atol=1e-2, rtol=1e-2), err_small

    print("KERNEL_OK")
</pallas_src>

<mosaic_0001>
module attributes {stable_mosaic.version = 11 : i64} {
  func.func @_transformer_kernel(%arg0: i32, %arg1: memref<384x128xbf16, #tpu.memory_space<vmem>>, %arg2: memref<128x128xbf16, #tpu.memory_space<vmem>>, %arg3: memref<1x128xf32, #tpu.memory_space<vmem>>, %arg4: memref<384x128xbf16, #tpu.memory_space<vmem>>) attributes {dimension_semantics = [#tpu.dimension_semantics<parallel>], iteration_bounds = array<i64: 1>, scalar_prefetch = 0 : i64, scratch_operands = 0 : i64, tpu.core_type = #tpu.core_type<tc>, window_params = [{transform_indices = @transform_0, window_bounds = array<i64: 384, 128>}, {pipeline_mode = #tpu.pipeline_mode<synchronous>, transform_indices = @transform_1, window_bounds = array<i64: 128, 128>}, {pipeline_mode = #tpu.pipeline_mode<synchronous>, transform_indices = @transform_2, window_bounds = array<i64: 1, 128>}, {transform_indices = @transform_3, window_bounds = array<i64: 384, 128>}]} {
    %c0 = arith.constant 0 : index
    %c0_0 = arith.constant 0 : index
    %0 = vector.load %arg1[%c0, %c0_0] : memref<384x128xbf16, #tpu.memory_space<vmem>>, vector<384x128xbf16>
    %c0_1 = arith.constant 0 : index
    %c0_2 = arith.constant 0 : index
    %1 = vector.load %arg2[%c0_1, %c0_2] : memref<128x128xbf16, #tpu.memory_space<vmem>>, vector<128x128xbf16>
    %cst = arith.constant dense<0.000000e+00> : vector<384x128xf32>
    %2 = tpu.matmul %0, %1, %cst {dimension_numbers = #tpu.dot_dimension_numbers<[1], [0], [0], [1], [0, 0, 1, 1], [], []>} : vector<384x128xbf16>, vector<128x128xbf16>, vector<384x128xf32> -> vector<384x128xf32>
    %c0_3 = arith.constant 0 : index
    %c0_4 = arith.constant 0 : index
    %3 = vector.load %arg3[%c0_3, %c0_4] : memref<1x128xf32, #tpu.memory_space<vmem>>, vector<1x128xf32>
    %4 = vector.broadcast %3 : vector<1x128xf32> to vector<384x128xf32>
    %5 = arith.addf %2, %4 : vector<384x128xf32>
    %cst_5 = arith.constant 0.000000e+00 : f32
    %6 = vector.broadcast %cst_5 : f32 to vector<384x128xf32>
    %7 = arith.maximumf %5, %6 : vector<384x128xf32>
    %8 = arith.truncf %7 : vector<384x128xf32> to vector<384x128xbf16>
    %c0_6 = arith.constant 0 : index
    %c0_7 = arith.constant 0 : index
    %9 = vector.load %arg4[%c0_6, %c0_7] : memref<384x128xbf16, #tpu.memory_space<vmem>>, vector<384x128xbf16>
    tpu.vector_store %arg4[%c0_6, %c0_7], %8 {strides = array<i32>} : memref<384x128xbf16, #tpu.memory_space<vmem>>, vector<384x128xbf16>,
    return
  }
  func.func @transform_0(%arg0: i32) -> (i32, i32) {
    %c0_i32 = arith.constant 0 : i32
    %c0_i32_0 = arith.constant 0 : i32
    return %arg0, %c0_i32 : i32, i32
  }
  func.func @transform_1(%arg0: i32) -> (i32, i32) {
    %c0_i32 = arith.constant 0 : i32
    %c0_i32_0 = arith.constant 0 : i32
    %c0_i32_1 = arith.constant 0 : i32
    return %c0_i32, %c0_i32_0 : i32, i32
  }
  func.func @transform_2(%arg0: i32) -> (i32, i32) {
    %c0_i32 = arith.constant 0 : i32
    %c0_i32_0 = arith.constant 0 : i32
    %c0_i32_1 = arith.constant 0 : i32
    return %c0_i32, %c0_i32_0 : i32, i32
  }
  func.func @transform_3(%arg0: i32) -> (i32, i32) {
    %c0_i32 = arith.constant 0 : i32
    %c0_i32_0 = arith.constant 0 : i32
    return %arg0, %c0_i32 : i32, i32
  }
}

</mosaic_0001>

<llo_original>
// kernel: tpu_custom_call.1
$region0: #{tpu_custom_call.1}
  #allocation0 [shape = 'u32[]', space=smem, size = 0x4, offset = 0x4, fixed_abs, tag = 'smem constant byte address 0x4 - core index']
  #allocation1 [shape = 'u32[144,128]{1,0:T(1,128)}', space=vmem, size = 0x12000, scoped, tag = 'internal scratch']
  %s0 = inlined_call_operand.hbm [shape: bf16[384,128], index: 0, kind: input, shape index: {}]
  %s1 = inlined_call_operand.hbm [shape: bf16[128,128], index: 1, kind: input, shape index: {}]
  %s2 = inlined_call_operand.vmem [shape: f32[1,128], index: 2, kind: input, shape index: {}]
  %s3 = inlined_call_operand.hbm [shape: bf16[384,128], index: 3, kind: output, shape index: {}]
  %s4 = sld [smem:[#allocation0]]
  $region30: #{tpu_custom_call.1} parent=0
    _
  %s6 = ssub.s32 1, %s4
  %s7 = scalar_select 0, %s6, %s4
  $region1: #{tpu_custom_call.1} parent=0
    #allocation2 [shape = 'u8[98304]{0}', space=vmem, size = 0x18000, scoped, tag = 'input window, operand 0, single buffered']
    #allocation3 [shape = 's32[1]{0}', space=sflag, size = 0x4, scoped, tag = 'scoped memory for tpu_custom_call.1']
    #allocation4 [shape = 's32[1]{0}', space=sflag, size = 0x4, scoped, tag = 'scoped memory for tpu_custom_call.1']
    #allocation5 [shape = 'u8[32768]{0}', space=vmem, size = 0x8000, scoped, tag = 'input window, operand 1, single buffered']
    #allocation6 [shape = 's32[1]{0}', space=sflag, size = 0x4, scoped, tag = 'scoped memory for tpu_custom_call.1']
    #allocation7 [shape = 'u8[98304]{0}', space=vmem, size = 0x18000, scoped, tag = 'output window, operand 0, single buffered']
    %8 = vsyncpa [#allocation3], 0
    %9 = vsyncpa [#allocation6], 0
    %10 = vsyncpa [#allocation4], 0
    // Predicated region
    $region2: #{tpu_custom_call.1} parent=1 // pred_check
      _
    $region3: #{tpu_custom_call.1} parent=1 // pred_check_branch
      %12 = sbr.rel (0) target = $region5
    $region4: #{tpu_custom_call.1} parent=1 // pred_region
      %s14 = ssub.s32 3072, 3072
      %15 = vsyncadd [#allocation3], %s14
      %s16 = sshll.u32 [#allocation2], 4
      %s17 = int_to_ptr.vmem [resolvable:$true] %s16
      %22 = dma.hbm_to_vmem [thread:$0]  %s0, 3072, %s17, [#allocation3], 64, 64, 4
    $region5: #{tpu_custom_call.1} parent=1 // pred_fallthru
      _
    // Predicated region
    $region6: #{tpu_custom_call.1} parent=1 // pred_check
      _
    $region7: #{tpu_custom_call.1} parent=1 // pred_check_branch
      %24 = sbr.rel (0) target = $region9
    $region8: #{tpu_custom_call.1} parent=1 // pred_region
      %s26 = ssub.s32 1024, 1024
      %27 = vsyncadd [#allocation6], %s26
      %s28 = sshll.u32 [#allocation5], 4
      %s29 = int_to_ptr.vmem [resolvable:$true] %s28
      %34 = dma.hbm_to_vmem [thread:$0]  %s1, 1024, %s29, [#allocation6], 64, 64, 4
    $region9: #{tpu_custom_call.1} parent=1 // pred_fallthru
      _
    // Predicated region
    $region10: #{tpu_custom_call.1} parent=1 // pred_check
      _
    $region11: #{tpu_custom_call.1} parent=1 // pred_check_branch
      %36 = sbr.rel (0) target = $region13
    $region12: #{tpu_custom_call.1} parent=1 // pred_region
      _
    $region13: #{tpu_custom_call.1} parent=1 // pred_fallthru
      _
    // Predicated region
    $region14: #{tpu_custom_call.1} parent=1 // pred_check
      _
    $region15: #{tpu_custom_call.1} parent=1 // pred_check_branch
      %38 = sbr.rel (0) target = $region17
    $region16: #{tpu_custom_call.1} parent=1 // pred_region
      %39 = dma.done [#allocation3], 3072
    $region17: #{tpu_custom_call.1} parent=1 // pred_fallthru
      _
    // Predicated region
    $region18: #{tpu_custom_call.1} parent=1 // pred_check
      _
    $region19: #{tpu_custom_call.1} parent=1 // pred_check_branch
      %41 = sbr.rel (0) target = $region21
    $region20: #{tpu_custom_call.1} parent=1 // pred_region
      %42 = dma.done [#allocation6], 1024
    $region21: #{tpu_custom_call.1} parent=1 // pred_fallthru
      _
    %v44 = vld [vmem:[#allocation2] sm:$0xf]
    %v45 = vld [vmem:[#allocation2 + $0x4] sm:$0xf]
    %v46 = vld [vmem:[#allocation2 + $0x8] sm:$0xf]
    %v47 = vld [vmem:[#allocation2 + $0xc] sm:$0xf]
    %v48 = vld [vmem:[#allocation2 + $0x10] sm:$0xf]
    %v49 = vld [vmem:[#allocation2 + $0x14] sm:$0xf]
    %v50 = vld [vmem:[#allocation2 + $0x18] sm:$0xf]
    %v51 = vld [vmem:[#allocation2 + $0x1c] sm:$0xf]
    %v52 = vld [vmem:[#allocation2 + $0x20] sm:$0xf]
    %v53 = vld [vmem:[#allocation2 + $0x24] sm:$0xf]
    %v54 = vld [vmem:[#allocation2 + $0x28] sm:$0xf]
    %v55 = vld [vmem:[#allocation2 + $0x2c] sm:$0xf]
    %v56 = vld [vmem:[#allocation2 + $0x30] sm:$0xf]
    %v57 = vld [vmem:[#allocation2 + $0x34] sm:$0xf]
    %v58 = vld [vmem:[#allocation2 + $0x38] sm:$0xf]
    %v59 = vld [vmem:[#allocation2 + $0x3c] sm:$0xf]
    %v60 = vld [vmem:[#allocation2 + $0x40] sm:$0xf]
    %v61 = vld [vmem:[#allocation2 + $0x44] sm:$0xf]
    %v62 = vld [vmem:[#allocation2 + $0x48] sm:$0xf]
    %v63 = vld [vmem:[#allocation2 + $0x4c] sm:$0xf]
    %v64 = vld [vmem:[#allocation2 + $0x50] sm:$0xf]
    %v65 = vld [vmem:[#allocation2 + $0x54] sm:$0xf]
    %v66 = vld [vmem:[#allocation2 + $0x58] sm:$0xf]
    %v67 = vld [vmem:[#allocation2 + $0x5c] sm:$0xf]
    %v68 = vld [vmem:[#allocation2 + $0x60] sm:$0xf]
    %v69 = vld [vmem:[#allocation2 + $0x64] sm:$0xf]
    %v70 = vld [vmem:[#allocation2 + $0x68] sm:$0xf]
    %v71 = vld [vmem:[#allocation2 + $0x6c] sm:$0xf]
    %v72 = vld [vmem:[#allocation2 + $0x70] sm:$0xf]
    %v73 = vld [vmem:[#allocation2 + $0x74] sm:$0xf]
    %v74 = vld [vmem:[#allocation2 + $0x78] sm:$0xf]
    %v75 = vld [vmem:[#allocation2 + $0x7c] sm:$0xf]
    %v76 = vld [vmem:[#allocation2 + $0x80] sm:$0xf]
    %v77 = vld [vmem:[#allocation2 + $0x84] sm:$0xf]
    %v78 = vld [vmem:[#allocation2 + $0x88] sm:$0xf]
    %v79 = vld [vmem:[#allocation2 + $0x8c] sm:$0xf]
    %v80 = vld [vmem:[#allocation2 + $0x90] sm:$0xf]
    %v81 = vld [vmem:[#allocation2 + $0x94] sm:$0xf]
    %v82 = vld [vmem:[#allocation2 + $0x98] sm:$0xf]
    %v83 = vld [vmem:[#allocation2 + $0x9c] sm:$0xf]
    %v84 = vld [vmem:[#allocation2 + $0xa0] sm:$0xf]
    %v85 = vld [vmem:[#allocation2 + $0xa4] sm:$0xf]
    %v86 = vld [vmem:[#allocation2 + $0xa8] sm:$0xf]
    %v87 = vld [vmem:[#allocation2 + $0xac] sm:$0xf]
    %v88 = vld [vmem:[#allocation2 + $0xb0] sm:$0xf]
    %v89 = vld [vmem:[#allocation2 + $0xb4] sm:$0xf]
    %v90 = vld [vmem:[#allocation2 + $0xb8] sm:$0xf]
    %v91 = vld [vmem:[#allocation2 + $0xbc] sm:$0xf]
    %v92 = vld [vmem:[#allocation5] sm:$0xf]
    %v93 = vld [vmem:[#allocation5 + $0x4] sm:$0xf]
    %v94 = vld [vmem:[#allocation5 + $0x8] sm:$0xf]
    %v95 = vld [vmem:[#allocation5 + $0xc] sm:$0xf]
    %v96 = vld [vmem:[#allocation5 + $0x10] sm:$0xf]
    %v97 = vld [vmem:[#allocation5 + $0x14] sm:$0xf]
    %v98 = vld [vmem:[#allocation5 + $0x18] sm:$0xf]
    %v99 = vld [vmem:[#allocation5 + $0x1c] sm:$0xf]
    %v100 = vld [vmem:[#allocation5 + $0x20] sm:$0xf]
    %v101 = vld [vmem:[#allocation5 + $0x24] sm:$0xf]
    %v102 = vld [vmem:[#allocation5 + $0x28] sm:$0xf]
    %v103 = vld [vmem:[#allocation5 + $0x2c] sm:$0xf]
    %v104 = vld [vmem:[#allocation5 + $0x30] sm:$0xf]
    %v105 = vld [vmem:[#allocation5 + $0x34] sm:$0xf]
    %v106 = vld [vmem:[#allocation5 + $0x38] sm:$0xf]
    %v107 = vld [vmem:[#allocation5 + $0x3c] sm:$0xf]
    %v108 = vld [vmem:[%s2] sm:$0x1]
    %v110 = vlaneseq
    %v111 = vshrl.u32 %v110, 7
    %v112 = vsub.s32 0, %v111
    %v113 = vrot.slane %v108, %v112
    %v163 = vunpack.c.l.b16 %v44
    %v164 = vunpack.c.l.b16 %v45
    %v165 = vunpack.c.l.b16 %v46
    %v166 = vunpack.c.l.b16 %v47
    %v167 = vunpack.c.l.b16 %v48
    %v168 = vunpack.c.l.b16 %v49
    %v169 = vunpack.c.l.b16 %v50
    %v170 = vunpack.c.l.b16 %v51
    %v171 = vunpack.c.l.b16 %v52
    %v172 = vunpack.c.l.b16 %v53
    %v173 = vunpack.c.l.b16 %v54
    %v174 = vunpack.c.l.b16 %v55
    %v175 = vunpack.c.l.b16 %v56
    %v176 = vunpack.c.l.b16 %v57
    %v177 = vunpack.c.l.b16 %v58
    %v178 = vunpack.c.l.b16 %v59
    %v179 = vunpack.c.l.b16 %v60
    %v180 = vunpack.c.l.b16 %v61
    %v181 = vunpack.c.l.b16 %v62
    %v182 = vunpack.c.l.b16 %v63
    %v183 = vunpack.c.l.b16 %v64
    %v184 = vunpack.c.l.b16 %v65
    %v185 = vunpack.c.l.b16 %v66
    %v186 = vunpack.c.l.b16 %v67
    %v187 = vunpack.c.l.b16 %v68
    %v188 = vunpack.c.l.b16 %v69
    %v189 = vunpack.c.l.b16 %v70
    %v190 = vunpack.c.l.b16 %v71
    %v191 = vunpack.c.l.b16 %v72
    %v192 = vunpack.c.l.b16 %v73
    %v193 = vunpack.c.l.b16 %v74
    %v194 = vunpack.c.l.b16 %v75
    %v195 = vunpack.c.l.b16 %v76
    %v196 = vunpack.c.l.b16 %v77
    %v197 = vunpack.c.l.b16 %v78
    %v198 = vunpack.c.l.b16 %v79
    %v199 = vunpack.c.l.b16 %v80
    %v200 = vunpack.c.l.b16 %v81
    %v201 = vunpack.c.l.b16 %v82
    %v202 = vunpack.c.l.b16 %v83
    %v203 = vunpack.c.l.b16 %v84
    %v204 = vunpack.c.l.b16 %v85
    %v205 = vunpack.c.l.b16 %v86
    %v206 = vunpack.c.l.b16 %v87
    %v207 = vunpack.c.l.b16 %v88
    %v208 = vunpack.c.l.b16 %v89
    %v209 = vunpack.c.l.b16 %v90
    %v210 = vunpack.c.l.b16 %v91
    %v211 = vpack.c.b16 %v164, %v163
    %v212 = vpack.c.b16 %v166, %v165
    %v213 = vpack.c.b16 %v168, %v167
    %v214 = vpack.c.b16 %v170, %v169
    %v215 = vpack.c.b16 %v172, %v171
    %v216 = vpack.c.b16 %v174, %v173
    %v217 = vpack.c.b16 %v176, %v175
    %v218 = vpack.c.b16 %v178, %v177
    %v219 = vpack.c.b16 %v180, %v179
    %v220 = vpack.c.b16 %v182, %v181
    %v221 = vpack.c.b16 %v184, %v183
    %v222 = vpack.c.b16 %v186, %v185
    %v223 = vpack.c.b16 %v188, %v187
    %v224 = vpack.c.b16 %v190, %v189
    %v225 = vpack.c.b16 %v192, %v191
    %v226 = vpack.c.b16 %v194, %v193
    %v227 = vpack.c.b16 %v196, %v195
    %v228 = vpack.c.b16 %v198, %v197
    %v229 = vpack.c.b16 %v200, %v199
    %v230 = vpack.c.b16 %v202, %v201
    %v231 = vpack.c.b16 %v204, %v203
    %v232 = vpack.c.b16 %v206, %v205
    %v233 = vpack.c.b16 %v208, %v207
    %v234 = vpack.c.b16 %v210, %v209
    %v275 = vunpack.c.l.b16 %v92
    %v276 = vunpack.c.l.b16 %v93
    %v277 = vunpack.c.l.b16 %v94
    %v278 = vunpack.c.l.b16 %v95
    %v279 = vunpack.c.l.b16 %v96
    %v280 = vunpack.c.l.b16 %v97
    %v281 = vunpack.c.l.b16 %v98
    %v282 = vunpack.c.l.b16 %v99
    %v283 = vunpack.c.l.b16 %v100
    %v284 = vunpack.c.l.b16 %v101
    %v285 = vunpack.c.l.b16 %v102
    %v286 = vunpack.c.l.b16 %v103
    %v287 = vunpack.c.l.b16 %v104
    %v288 = vunpack.c.l.b16 %v105
    %v289 = vunpack.c.l.b16 %v106
    %v290 = vunpack.c.l.b16 %v107
    %v291 = vpack.c.b16 %v276, %v275
    %v292 = vpack.c.b16 %v278, %v277
    %v293 = vpack.c.b16 %v280, %v279
    %v294 = vpack.c.b16 %v282, %v281
    %v295 = vpack.c.b16 %v284, %v283
    %v296 = vpack.c.b16 %v286, %v285
    %v297 = vpack.c.b16 %v288, %v287
    %v298 = vpack.c.b16 %v290, %v289
    %307 = vmatprep.subr.bf16.mxu0 0
    %308 = vmatpush1.bf16.msra.mxu0 %v298
    %309 = vmatprep.subr.bf16.mxu0 0
    %310 = vmatpush1.bf16.msra.mxu0 %v297
    %311 = vmatprep.subr.bf16.mxu0 0
    %312 = vmatpush1.bf16.msra.mxu0 %v296
    %313 = vmatprep.subr.bf16.mxu0 0
    %314 = vmatpush1.bf16.msra.mxu0 %v295
    %315 = vmatprep.subr.bf16.mxu0 0
    %316 = vmatpush1.bf16.msra.mxu0 %v294
    %317 = vmatprep.subr.bf16.mxu0 0
    %318 = vmatpush1.bf16.msra.mxu0 %v293
    %319 = vmatprep.subr.bf16.mxu0 0
    %320 = vmatpush1.bf16.msra.mxu0 %v292
    %321 = vmatprep.subr.bf16.mxu0 0
    %322 = vmatpush1.bf16.msra.mxu0 %v291
    %323 = vmatprep.subr.bf16.mxu0 0
    %324 = vmatpush2.bf16.msra.mxu0 0
    %325 = vmatprep.subr.bf16.mxu0 0
    %326 = vmatpush2.bf16.msra.mxu0 0
    %327 = vmatprep.subr.bf16.mxu0 0
    %328 = vmatpush2.bf16.msra.mxu0 0
    %329 = vmatprep.subr.bf16.mxu0 0
    %330 = vmatpush2.bf16.msra.mxu0 0
    %331 = vmatprep.subr.bf16.mxu0 0
    %332 = vmatpush2.bf16.msra.mxu0 0
    %333 = vmatprep.subr.bf16.mxu0 0
    %334 = vmatpush2.bf16.msra.mxu0 0
    %335 = vmatprep.subr.bf16.mxu0 0
    %336 = vmatpush2.bf16.msra.mxu0 0
    %337 = vmatprep.subr.bf16.mxu0 0
    %338 = vmatpush2.bf16.msra.mxu0 0
    %339 = vmatprep.mubr.bf16.mxu0 0
    %340 = vmatmul.mubr.bf16.gmra.mxu0 %v211
    %v341 = vpop.f32.mrf.mxu0
    %v342 = vadd.f32 %v113, %v341
    %v343 = vpop.f32.mrf.mxu0
    %v344 = vpop.f32.mrf.mxu0
    %v345 = vadd.f32 %v113, %v344
    %v346 = vpop.f32.mrf.mxu0
    %347 = vmatprep.mubr.bf16.mxu0 0
    %348 = vmatmul.mubr.bf16.gmra.mxu0 %v212
    %v349 = vpop.f32.mrf.mxu0
    %v350 = vadd.f32 %v113, %v349
    %v351 = vpop.f32.mrf.mxu0
    %v352 = vpop.f32.mrf.mxu0
    %v353 = vadd.f32 %v113, %v352
    %v354 = vpop.f32.mrf.mxu0
    %355 = vmatprep.mubr.bf16.mxu0 0
    %356 = vmatmul.mubr.bf16.gmra.mxu0 %v213
    %v357 = vpop.f32.mrf.mxu0
    %v358 = vadd.f32 %v113, %v357
    %v359 = vpop.f32.mrf.mxu0
    %v360 = vpop.f32.mrf.mxu0
    %v361 = vadd.f32 %v113, %v360
    %v362 = vpop.f32.mrf.mxu0
    %363 = vmatprep.mubr.bf16.mxu0 0
    %364 = vmatmul.mubr.bf16.gmra.mxu0 %v214
    %v365 = vpop.f32.mrf.mxu0
    %v366 = vadd.f32 %v113, %v365
    %v367 = vpop.f32.mrf.mxu0
    %v368 = vpop.f32.mrf.mxu0
    %v369 = vadd.f32 %v113, %v368
    %v370 = vpop.f32.mrf.mxu0
    %371 = vmatprep.mubr.bf16.mxu0 0
    %372 = vmatmul.mubr.bf16.gmra.mxu0 %v215
    %v373 = vpop.f32.mrf.mxu0
    %v374 = vadd.f32 %v113, %v373
    %v375 = vpop.f32.mrf.mxu0
    %v376 = vpop.f32.mrf.mxu0
    %v377 = vadd.f32 %v113, %v376
    %v378 = vpop.f32.mrf.mxu0
    %379 = vmatprep.mubr.bf16.mxu0 0
    %380 = vmatmul.mubr.bf16.gmra.mxu0 %v216
    %v381 = vpop.f32.mrf.mxu0
    %v382 = vadd.f32 %v113, %v381
    %v383 = vpop.f32.mrf.mxu0
    %v384 = vpop.f32.mrf.mxu0
    %v385 = vadd.f32 %v113, %v384
    %v386 = vpop.f32.mrf.mxu0
    %387 = vmatprep.mubr.bf16.mxu0 0
    %388 = vmatmul.mubr.bf16.gmra.mxu0 %v217
    %v389 = vpop.f32.mrf.mxu0
    %v390 = vadd.f32 %v113, %v389
    %v391 = vpop.f32.mrf.mxu0
    %v392 = vpop.f32.mrf.mxu0
    %v393 = vadd.f32 %v113, %v392
    %v394 = vpop.f32.mrf.mxu0
    %395 = vmatprep.mubr.bf16.mxu0 0
    %396 = vmatmul.mubr.bf16.gmra.mxu0 %v218
    %v397 = vpop.f32.mrf.mxu0
    %v398 = vadd.f32 %v113, %v397
    %v399 = vpop.f32.mrf.mxu0
    %v400 = vpop.f32.mrf.mxu0
    %v401 = vadd.f32 %v113, %v400
    %v402 = vpop.f32.mrf.mxu0
    %403 = vmatprep.mubr.bf16.mxu0 0
    %404 = vmatmul.mubr.bf16.gmra.mxu0 %v219
    %v405 = vpop.f32.mrf.mxu0
    %v406 = vadd.f32 %v113, %v405
    %v407 = vpop.f32.mrf.mxu0
    %v408 = vpop.f32.mrf.mxu0
    %v409 = vadd.f32 %v113, %v408
    %v410 = vpop.f32.mrf.mxu0
    %411 = vmatprep.mubr.bf16.mxu0 0
    %412 = vmatmul.mubr.bf16.gmra.mxu0 %v220
    %v413 = vpop.f32.mrf.mxu0
    %v414 = vadd.f32 %v113, %v413
    %v415 = vpop.f32.mrf.mxu0
    %v416 = vpop.f32.mrf.mxu0
    %v417 = vadd.f32 %v113, %v416
    %v418 = vpop.f32.mrf.mxu0
    %419 = vmatprep.mubr.bf16.mxu0 0
    %420 = vmatmul.mubr.bf16.gmra.mxu0 %v221
    %v421 = vpop.f32.mrf.mxu0
    %v422 = vadd.f32 %v113, %v421
    %v423 = vpop.f32.mrf.mxu0
    %v424 = vpop.f32.mrf.mxu0
    %v425 = vadd.f32 %v113, %v424
    %v426 = vpop.f32.mrf.mxu0
    %427 = vmatprep.mubr.bf16.mxu0 0
    %428 = vmatmul.mubr.bf16.gmra.mxu0 %v222
    %v429 = vpop.f32.mrf.mxu0
    %v430 = vadd.f32 %v113, %v429
    %v431 = vpop.f32.mrf.mxu0
    %v432 = vpop.f32.mrf.mxu0
    %v433 = vadd.f32 %v113, %v432
    %v434 = vpop.f32.mrf.mxu0
    %435 = vmatprep.mubr.bf16.mxu0 0
    %436 = vmatmul.mubr.bf16.gmra.mxu0 %v223
    %v437 = vpop.f32.mrf.mxu0
    %v438 = vadd.f32 %v113, %v437
    %v439 = vpop.f32.mrf.mxu0
    %v440 = vpop.f32.mrf.mxu0
    %v441 = vadd.f32 %v113, %v440
    %v442 = vpop.f32.mrf.mxu0
    %443 = vmatprep.mubr.bf16.mxu0 0
    %444 = vmatmul.mubr.bf16.gmra.mxu0 %v224
    %v445 = vpop.f32.mrf.mxu0
    %v446 = vadd.f32 %v113, %v445
    %v447 = vpop.f32.mrf.mxu0
    %v448 = vpop.f32.mrf.mxu0
    %v449 = vadd.f32 %v113, %v448
    %v450 = vpop.f32.mrf.mxu0
    %451 = vmatprep.mubr.bf16.mxu0 0
    %452 = vmatmul.mubr.bf16.gmra.mxu0 %v225
    %v453 = vpop.f32.mrf.mxu0
    %v454 = vadd.f32 %v113, %v453
    %v455 = vpop.f32.mrf.mxu0
    %v456 = vpop.f32.mrf.mxu0
    %v457 = vadd.f32 %v113, %v456
    %v458 = vpop.f32.mrf.mxu0
    %459 = vmatprep.mubr.bf16.mxu0 0
    %460 = vmatmul.mubr.bf16.gmra.mxu0 %v226
    %v461 = vpop.f32.mrf.mxu0
    %v462 = vadd.f32 %v113, %v461
    %v463 = vpop.f32.mrf.mxu0
    %v464 = vpop.f32.mrf.mxu0
    %v465 = vadd.f32 %v113, %v464
    %v466 = vpop.f32.mrf.mxu0
    %467 = vmatprep.mubr.bf16.mxu0 0
    %468 = vmatmul.mubr.bf16.gmra.mxu0 %v227
    %v469 = vpop.f32.mrf.mxu0
    %v470 = vadd.f32 %v113, %v469
    %v471 = vpop.f32.mrf.mxu0
    %v472 = vpop.f32.mrf.mxu0
    %v473 = vadd.f32 %v113, %v472
    %v474 = vpop.f32.mrf.mxu0
    %475 = vmatprep.mubr.bf16.mxu0 0
    %476 = vmatmul.mubr.bf16.gmra.mxu0 %v228
    %v477 = vpop.f32.mrf.mxu0
    %v478 = vadd.f32 %v113, %v477
    %v479 = vpop.f32.mrf.mxu0
    %v480 = vpop.f32.mrf.mxu0
    %v481 = vadd.f32 %v113, %v480
    %v482 = vpop.f32.mrf.mxu0
    %483 = vmatprep.mubr.bf16.mxu0 0
    %484 = vmatmul.mubr.bf16.gmra.mxu0 %v229
    %v485 = vpop.f32.mrf.mxu0
    %v486 = vadd.f32 %v113, %v485
    %v487 = vpop.f32.mrf.mxu0
    %v488 = vpop.f32.mrf.mxu0
    %v489 = vadd.f32 %v113, %v488
    %v490 = vpop.f32.mrf.mxu0
    %491 = vmatprep.mubr.bf16.mxu0 0
    %492 = vmatmul.mubr.bf16.gmra.mxu0 %v230
    %v493 = vpop.f32.mrf.mxu0
    %v494 = vadd.f32 %v113, %v493
    %v495 = vpop.f32.mrf.mxu0
    %v496 = vpop.f32.mrf.mxu0
    %v497 = vadd.f32 %v113, %v496
    %v498 = vpop.f32.mrf.mxu0
    %499 = vmatprep.mubr.bf16.mxu0 0
    %500 = vmatmul.mubr.bf16.gmra.mxu0 %v231
    %v501 = vpop.f32.mrf.mxu0
    %v502 = vadd.f32 %v113, %v501
    %v503 = vpop.f32.mrf.mxu0
    %v504 = vpop.f32.mrf.mxu0
    %v505 = vadd.f32 %v113, %v504
    %v506 = vpop.f32.mrf.mxu0
    %507 = vmatprep.mubr.bf16.mxu0 0
    %508 = vmatmul.mubr.bf16.gmra.mxu0 %v232
    %v509 = vpop.f32.mrf.mxu0
    %v510 = vadd.f32 %v113, %v509
    %v511 = vpop.f32.mrf.mxu0
    %v512 = vpop.f32.mrf.mxu0
    %v513 = vadd.f32 %v113, %v512
    %v514 = vpop.f32.mrf.mxu0
    %515 = vmatprep.mubr.bf16.mxu0 0
    %516 = vmatmul.mubr.bf16.gmra.mxu0 %v233
    %v517 = vpop.f32.mrf.mxu0
    %v518 = vadd.f32 %v113, %v517
    %v519 = vpop.f32.mrf.mxu0
    %v520 = vpop.f32.mrf.mxu0
    %v521 = vadd.f32 %v113, %v520
    %v522 = vpop.f32.mrf.mxu0
    %523 = vmatprep.mubr.bf16.mxu0 0
    %524 = vmatmul.mubr.bf16.gmra.mxu0 %v234
    %v525 = vpop.f32.mrf.mxu0
    %v526 = vadd.f32 %v113, %v525
    %v527 = vpop.f32.mrf.mxu0
    %v528 = vpop.f32.mrf.mxu0
    %v529 = vadd.f32 %v113, %v528
    %v530 = vpop.f32.mrf.mxu0
    %531 = vdwg.mxu0
    %v532 = vmax.f32 %v342, 0.0
    %v533 = vmax.f32 %v345, 0.0
    %v534 = vmax.f32 %v350, 0.0
    %v535 = vmax.f32 %v353, 0.0
    %v536 = vmax.f32 %v358, 0.0
    %v537 = vmax.f32 %v361, 0.0
    %v538 = vmax.f32 %v366, 0.0
    %v539 = vmax.f32 %v369, 0.0
    %v540 = vmax.f32 %v374, 0.0
    %v541 = vmax.f32 %v377, 0.0
    %v542 = vmax.f32 %v382, 0.0
    %v543 = vmax.f32 %v385, 0.0
    %v544 = vmax.f32 %v390, 0.0
    %v545 = vmax.f32 %v393, 0.0
    %v546 = vmax.f32 %v398, 0.0
    %v547 = vmax.f32 %v401, 0.0
    %v548 = vmax.f32 %v406, 0.0
    %v549 = vmax.f32 %v409, 0.0
    %v550 = vmax.f32 %v414, 0.0
    %v551 = vmax.f32 %v417, 0.0
    %v552 = vmax.f32 %v422, 0.0
    %v553 = vmax.f32 %v425, 0.0
    %v554 = vmax.f32 %v430, 0.0
    %v555 = vmax.f32 %v433, 0.0
    %v556 = vmax.f32 %v438, 0.0
    %v557 = vmax.f32 %v441, 0.0
    %v558 = vmax.f32 %v446, 0.0
    %v559 = vmax.f32 %v449, 0.0
    %v560 = vmax.f32 %v454, 0.0
    %v561 = vmax.f32 %v457, 0.0
    %v562 = vmax.f32 %v462, 0.0
    %v563 = vmax.f32 %v465, 0.0
    %v564 = vmax.f32 %v470, 0.0
    %v565 = vmax.f32 %v473, 0.0
    %v566 = vmax.f32 %v478, 0.0
    %v567 = vmax.f32 %v481, 0.0
    %v568 = vmax.f32 %v486, 0.0
    %v569 = vmax.f32 %v489, 0.0
    %v570 = vmax.f32 %v494, 0.0
    %v571 = vmax.f32 %v497, 0.0
    %v572 = vmax.f32 %v502, 0.0
    %v573 = vmax.f32 %v505, 0.0
    %v574 = vmax.f32 %v510, 0.0
    %v575 = vmax.f32 %v513, 0.0
    %v576 = vmax.f32 %v518, 0.0
    %v577 = vmax.f32 %v521, 0.0
    %v578 = vmax.f32 %v526, 0.0
    %v579 = vmax.f32 %v529, 0.0
    %v580 = vpack.c.bf16 %v533, %v532
    %v581 = vpack.c.bf16 %v535, %v534
    %v582 = vpack.c.bf16 %v537, %v536
    %v583 = vpack.c.bf16 %v539, %v538
    %v584 = vpack.c.bf16 %v541, %v540
    %v585 = vpack.c.bf16 %v543, %v542
    %v586 = vpack.c.bf16 %v545, %v544
    %v587 = vpack.c.bf16 %v547, %v546
    %v588 = vpack.c.bf16 %v549, %v548
    %v589 = vpack.c.bf16 %v551, %v550
    %v590 = vpack.c.bf16 %v553, %v552
    %v591 = vpack.c.bf16 %v555, %v554
    %v592 = vpack.c.bf16 %v557, %v556
    %v593 = vpack.c.bf16 %v559, %v558
    %v594 = vpack.c.bf16 %v561, %v560
    %v595 = vpack.c.bf16 %v563, %v562
    %v596 = vpack.c.bf16 %v565, %v564
    %v597 = vpack.c.bf16 %v567, %v566
    %v598 = vpack.c.bf16 %v569, %v568
    %v599 = vpack.c.bf16 %v571, %v570
    %v600 = vpack.c.bf16 %v573, %v572
    %v601 = vpack.c.bf16 %v575, %v574
    %v602 = vpack.c.bf16 %v577, %v576
    %v603 = vpack.c.bf16 %v579, %v578
    %v628 = vunpack.c.l.b16 %v580
    %v629 = vunpack.c.h.b16 %v580
    %v630 = vunpack.c.l.b16 %v581
    %v631 = vunpack.c.h.b16 %v581
    %v632 = vunpack.c.l.b16 %v582
    %v633 = vunpack.c.h.b16 %v582
    %v634 = vunpack.c.l.b16 %v583
    %v635 = vunpack.c.h.b16 %v583
    %v636 = vunpack.c.l.b16 %v584
    %v637 = vunpack.c.h.b16 %v584
    %v638 = vunpack.c.l.b16 %v585
    %v639 = vunpack.c.h.b16 %v585
    %v640 = vunpack.c.l.b16 %v586
    %v641 = vunpack.c.h.b16 %v586
    %v642 = vunpack.c.l.b16 %v587
    %v643 = vunpack.c.h.b16 %v587
    %v644 = vunpack.c.l.b16 %v588
    %v645 = vunpack.c.h.b16 %v588
    %v646 = vunpack.c.l.b16 %v589
    %v647 = vunpack.c.h.b16 %v589
    %v648 = vunpack.c.l.b16 %v590
    %v649 = vunpack.c.h.b16 %v590
    %v650 = vunpack.c.l.b16 %v591
    %v651 = vunpack.c.h.b16 %v591
    %v652 = vunpack.c.l.b16 %v592
    %v653 = vunpack.c.h.b16 %v592
    %v654 = vunpack.c.l.b16 %v593
    %v655 = vunpack.c.h.b16 %v593
    %v656 = vunpack.c.l.b16 %v594
    %v657 = vunpack.c.h.b16 %v594
    %v658 = vunpack.c.l.b16 %v595
    %v659 = vunpack.c.h.b16 %v595
    %v660 = vunpack.c.l.b16 %v596
    %v661 = vunpack.c.h.b16 %v596
    %v662 = vunpack.c.l.b16 %v597
    %v663 = vunpack.c.h.b16 %v597
    %v664 = vunpack.c.l.b16 %v598
    %v665 = vunpack.c.h.b16 %v598
    %v666 = vunpack.c.l.b16 %v599
    %v667 = vunpack.c.h.b16 %v599
    %v668 = vunpack.c.l.b16 %v600
    %v669 = vunpack.c.h.b16 %v600
    %v670 = vunpack.c.l.b16 %v601
    %v671 = vunpack.c.h.b16 %v601
    %v672 = vunpack.c.l.b16 %v602
    %v673 = vunpack.c.h.b16 %v602
    %v674 = vunpack.c.l.b16 %v603
    %v675 = vunpack.c.h.b16 %v603
    %v676 = vpack.c.b16 %v628, %v628
    %v677 = vpack.c.b16 %v629, %v629
    %v678 = vpack.c.b16 %v630, %v630
    %v679 = vpack.c.b16 %v631, %v631
    %v680 = vpack.c.b16 %v632, %v632
    %v681 = vpack.c.b16 %v633, %v633
    %v682 = vpack.c.b16 %v634, %v634
    %v683 = vpack.c.b16 %v635, %v635
    %v684 = vpack.c.b16 %v636, %v636
    %v685 = vpack.c.b16 %v637, %v637
    %v686 = vpack.c.b16 %v638, %v638
    %v687 = vpack.c.b16 %v639, %v639
    %v688 = vpack.c.b16 %v640, %v640
    %v689 = vpack.c.b16 %v641, %v641
    %v690 = vpack.c.b16 %v642, %v642
    %v691 = vpack.c.b16 %v643, %v643
    %v692 = vpack.c.b16 %v644, %v644
    %v693 = vpack.c.b16 %v645, %v645
    %v694 = vpack.c.b16 %v646, %v646
    %v695 = vpack.c.b16 %v647, %v647
    %v696 = vpack.c.b16 %v648, %v648
    %v697 = vpack.c.b16 %v649, %v649
    %v698 = vpack.c.b16 %v650, %v650
    %v699 = vpack.c.b16 %v651, %v651
    %v700 = vpack.c.b16 %v652, %v652
    %v701 = vpack.c.b16 %v653, %v653
    %v702 = vpack.c.b16 %v654, %v654
    %v703 = vpack.c.b16 %v655, %v655
    %v704 = vpack.c.b16 %v656, %v656
    %v705 = vpack.c.b16 %v657, %v657
    %v706 = vpack.c.b16 %v658, %v658
    %v707 = vpack.c.b16 %v659, %v659
    %v708 = vpack.c.b16 %v660, %v660
    %v709 = vpack.c.b16 %v661, %v661
    %v710 = vpack.c.b16 %v662, %v662
    %v711 = vpack.c.b16 %v663, %v663
    %v712 = vpack.c.b16 %v664, %v664
    %v713 = vpack.c.b16 %v665, %v665
    %v714 = vpack.c.b16 %v666, %v666
    %v715 = vpack.c.b16 %v667, %v667
    %v716 = vpack.c.b16 %v668, %v668
    %v717 = vpack.c.b16 %v669, %v669
    %v718 = vpack.c.b16 %v670, %v670
    %v719 = vpack.c.b16 %v671, %v671
    %v720 = vpack.c.b16 %v672, %v672
    %v721 = vpack.c.b16 %v673, %v673
    %v722 = vpack.c.b16 %v674, %v674
    %v723 = vpack.c.b16 %v675, %v675
    %772 = vst [vmem:[#allocation7] sm:$0xf] %v676
    %773 = vst [vmem:[#allocation7 + $0x4] sm:$0xf] %v677
    %774 = vst [vmem:[#allocation7 + $0x8] sm:$0xf] %v678
    %775 = vst [vmem:[#allocation7 + $0xc] sm:$0xf] %v679
    %776 = vst [vmem:[#allocation7 + $0x10] sm:$0xf] %v680
    %777 = vst [vmem:[#allocation7 + $0x14] sm:$0xf] %v681
    %778 = vst [vmem:[#allocation7 + $0x18] sm:$0xf] %v682
    %779 = vst [vmem:[#allocation7 + $0x1c] sm:$0xf] %v683
    %780 = vst [vmem:[#allocation7 + $0x20] sm:$0xf] %v684
    %781 = vst [vmem:[#allocation7 + $0x24] sm:$0xf] %v685
    %782 = vst [vmem:[#allocation7 + $0x28] sm:$0xf] %v686
    %783 = vst [vmem:[#allocation7 + $0x2c] sm:$0xf] %v687
    %784 = vst [vmem:[#allocation7 + $0x30] sm:$0xf] %v688
    %785 = vst [vmem:[#allocation7 + $0x34] sm:$0xf] %v689
    %786 = vst [vmem:[#allocation7 + $0x38] sm:$0xf] %v690
    %787 = vst [vmem:[#allocation7 + $0x3c] sm:$0xf] %v691
    %788 = vst [vmem:[#allocation7 + $0x40] sm:$0xf] %v692
    %789 = vst [vmem:[#allocation7 + $0x44] sm:$0xf] %v693
    %790 = vst [vmem:[#allocation7 + $0x48] sm:$0xf] %v694
    %791 = vst [vmem:[#allocation7 + $0x4c] sm:$0xf] %v695
    %792 = vst [vmem:[#allocation7 + $0x50] sm:$0xf] %v696
    %793 = vst [vmem:[#allocation7 + $0x54] sm:$0xf] %v697
    %794 = vst [vmem:[#allocation7 + $0x58] sm:$0xf] %v698
    %795 = vst [vmem:[#allocation7 + $0x5c] sm:$0xf] %v699
    %796 = vst [vmem:[#allocation7 + $0x60] sm:$0xf] %v700
    %797 = vst [vmem:[#allocation7 + $0x64] sm:$0xf] %v701
    %798 = vst [vmem:[#allocation7 + $0x68] sm:$0xf] %v702
    %799 = vst [vmem:[#allocation7 + $0x6c] sm:$0xf] %v703
    %800 = vst [vmem:[#allocation7 + $0x70] sm:$0xf] %v704
    %801 = vst [vmem:[#allocation7 + $0x74] sm:$0xf] %v705
    %802 = vst [vmem:[#allocation7 + $0x78] sm:$0xf] %v706
    %803 = vst [vmem:[#allocation7 + $0x7c] sm:$0xf] %v707
    %804 = vst [vmem:[#allocation7 + $0x80] sm:$0xf] %v708
    %805 = vst [vmem:[#allocation7 + $0x84] sm:$0xf] %v709
    %806 = vst [vmem:[#allocation7 + $0x88] sm:$0xf] %v710
    %807 = vst [vmem:[#allocation7 + $0x8c] sm:$0xf] %v711
    %808 = vst [vmem:[#allocation7 + $0x90] sm:$0xf] %v712
    %809 = vst [vmem:[#allocation7 + $0x94] sm:$0xf] %v713
    %810 = vst [vmem:[#allocation7 + $0x98] sm:$0xf] %v714
    %811 = vst [vmem:[#allocation7 + $0x9c] sm:$0xf] %v715
    %812 = vst [vmem:[#allocation7 + $0xa0] sm:$0xf] %v716
    %813 = vst [vmem:[#allocation7 + $0xa4] sm:$0xf] %v717
    %814 = vst [vmem:[#allocation7 + $0xa8] sm:$0xf] %v718
    %815 = vst [vmem:[#allocation7 + $0xac] sm:$0xf] %v719
    %816 = vst [vmem:[#allocation7 + $0xb0] sm:$0xf] %v720
    %817 = vst [vmem:[#allocation7 + $0xb4] sm:$0xf] %v721
    %818 = vst [vmem:[#allocation7 + $0xb8] sm:$0xf] %v722
    %819 = vst [vmem:[#allocation7 + $0xbc] sm:$0xf] %v723
    // Predicated region
    $region22: #{tpu_custom_call.1} parent=1 // pred_check
      _
    $region23: #{tpu_custom_call.1} parent=1 // pred_check_branch
      %821 = sbr.rel (0) target = $region25
    $region24: #{tpu_custom_call.1} parent=1 // pred_region
      %s823 = ssub.s32 3072, 3072
      %824 = vsyncadd [#allocation4], %s823
      %s825 = sshll.u32 [#allocation7], 4
      %s826 = int_to_ptr.vmem [resolvable:$true] %s825
      %831 = dma.vmem_to_hbm [thread:$0]  %s826, 3072, %s3, [#allocation4], 64, 64, 4
    $region25: #{tpu_custom_call.1} parent=1 // pred_fallthru
      _
    // Predicated region
    $region26: #{tpu_custom_call.1} parent=1 // pred_check
      _
    $region27: #{tpu_custom_call.1} parent=1 // pred_check_branch
      %833 = sbr.rel (0) target = $region29
    $region28: #{tpu_custom_call.1} parent=1 // pred_region
      %834 = dma.done [#allocation4], 3072
    $region29: #{tpu_custom_call.1} parent=1 // pred_fallthru
      _
    %835 = vsyncpa [#allocation3], 1
    %836 = vsyncpa [#allocation6], 1
    %837 = vsyncpa [#allocation4], 1

</llo_original>
